<compile_context>
chip_gen: v7x
topology: tpu7x:2x2x1
jax: 0.10.0
libtpu: 0.0.40
codegen_flags: <defaults>
</compile_context>

<pallas_src>
import functools

import jax
import jax.numpy as jnp
from jax.experimental import pallas as pl
from jax.experimental.pallas import tpu as pltpu


Z_DIM = 2
HIDDEN = 64
EPS = 1e-7


def _round_up(n, m):
    return ((n + m - 1) // m) * m


def _choose_tb(batch, block_batch):
    """Batch tile: lane-dense (multiple of 128) when tiling, full-array block
    for small batches, >=2 grid steps for batch >= 512 (v7x megacore)."""
    bb = max(128, _round_up(block_batch, 128))
    if batch <= bb:
        if batch < 512:
            return batch            # one full-array block (always spec-legal)
        return min(bb, _round_up(pl.cdiv(batch, 2), 128))
    return bb


def _gaussian_sample_kernel(x_ref, w1t_ref, b1_ref, w2mu_ref, b2mu_ref,
                            w2sg_ref, b2sg_ref, mu_ref, sg_ref):
    # Feature-major: transpose the x block once (XLU; hides under the x DMA).
    x_t = x_ref[...].T                                        # (64, TB)
    if x_t.dtype != w1t_ref.dtype:
        x_t = x_t.astype(w1t_ref.dtype)

    # Layer 1: h^T = W1^T . x^T + b1, ReLU.   (64, TB)
    h = jnp.dot(w1t_ref[...], x_t, preferred_element_type=jnp.float32)
    h = jnp.maximum(h + b1_ref[...], 0.0)                     # b1: (64, 1)
    if h.dtype != w2mu_ref.dtype:
        h = h.astype(w2mu_ref.dtype)

    # Layer 2, pre-split into mu / sigma halves -> (zp, TB) each; no slicing.
    mu = jnp.dot(w2mu_ref[...], h, preferred_element_type=jnp.float32)
    mu = mu + b2mu_ref[...]                                   # (zp, 1)
    s = jnp.dot(w2sg_ref[...], h, preferred_element_type=jnp.float32)
    s = s + b2sg_ref[...]

    # Numerically stable softplus + eps (sigma rows only, already separated).
    sg = jnp.log1p(jnp.exp(-jnp.abs(s))) + jnp.maximum(s, 0.0) + EPS

    mu_ref[...] = mu.astype(mu_ref.dtype)
    sg_ref[...] = sg.astype(sg_ref.dtype)


@functools.partial(jax.jit,
                   static_argnames=("z_dim", "block_batch", "use_bf16_matmul"))
def gaussian_sample(x, w1, b1, w2, b2, *, z_dim=Z_DIM, block_batch=8192,
                    use_bf16_matmul=False):
    """x: (batch, 64). Weights stored (in, out): w1 (64,64), b1 (64,),
    w2 (64, 2*z_dim), b2 (2*z_dim,). Returns (mu, sigma), each (batch, z_dim),
    float32 - the parameters of Independent(Normal(mu, sigma), 1)."""
    batch, feat = x.shape
    assert feat == HIDDEN, f"expected feature dim {HIDDEN}, got {feat}"
    assert w1.shape == (HIDDEN, HIDDEN) and w2.shape == (HIDDEN, 2 * z_dim)

    tb = _choose_tb(batch, block_batch)
    grid = (pl.cdiv(batch, tb),)    # ragged last block handled by Pallas

    # Tiny, one-time weight plumbing (feature-major, mu/sigma split, sublane
    # padding to zp rows so all matmul/store dims are tile-friendly).
    zp = _round_up(z_dim, 8)
    wdt = jnp.bfloat16 if use_bf16_matmul else jnp.float32
    w1_t = w1.T.astype(wdt)                                   # (64_out, 64_in)
    w2_t = w2.T                                               # (2*z, 64)
    w2_mu = jnp.pad(w2_t[:z_dim], ((0, zp - z_dim), (0, 0))).astype(wdt)
    w2_sg = jnp.pad(w2_t[z_dim:], ((0, zp - z_dim), (0, 0))).astype(wdt)
    b1_c = b1.reshape(HIDDEN, 1).astype(jnp.float32)
    b2_mu = jnp.pad(b2[:z_dim].reshape(z_dim, 1),
                    ((0, zp - z_dim), (0, 0))).astype(jnp.float32)
    b2_sg = jnp.pad(b2[z_dim:].reshape(z_dim, 1),
                    ((0, zp - z_dim), (0, 0))).astype(jnp.float32)

    out_sds = jax.ShapeDtypeStruct((zp, batch), jnp.float32)
    const = lambda i: (0, 0)

    mu_t, sg_t = pl.pallas_call(
        _gaussian_sample_kernel,
        out_shape=(out_sds, out_sds),
        grid=grid,
        in_specs=[
            # x: batch-tiled, double-buffered by the Pallas pipeline.
            pl.BlockSpec((tb, HIDDEN), lambda i: (i, 0)),
            # Weights / biases: constant index_map -> resident in VMEM.
            pl.BlockSpec((HIDDEN, HIDDEN), const),
            pl.BlockSpec((HIDDEN, 1), const),
            pl.BlockSpec((zp, HIDDEN), const),
            pl.BlockSpec((zp, 1), const),
            pl.BlockSpec((zp, HIDDEN), const),
            pl.BlockSpec((zp, 1), const),
        ],
        out_specs=(
            pl.BlockSpec((zp, tb), lambda i: (0, i)),
            pl.BlockSpec((zp, tb), lambda i: (0, i)),
        ),
        compiler_params=pltpu.CompilerParams(
            dimension_semantics=("parallel",),
            vmem_limit_bytes=48 * 1024 * 1024,
        ),
    )(x, w1_t, b1_c, w2_mu, b2_mu, w2_sg, b2_sg)

    # Drop the padded rows and return batch-major (tiny XLA ops).
    mu = mu_t[:z_dim, :].T
    sigma = sg_t[:z_dim, :].T
    return mu, sigma


def init_params(key, z_dim=Z_DIM):
    """Parameter init matching the module's shapes (stored as (in, out))."""
    k1, k2, k3, k4 = jax.random.split(key, 4)
    bound = 1.0 / jnp.sqrt(HIDDEN)
    w1 = jax.random.uniform(k1, (HIDDEN, HIDDEN), jnp.float32, -bound, bound)
    b1 = jax.random.uniform(k2, (HIDDEN,), jnp.float32, -bound, bound)
    w2 = jax.random.uniform(k3, (HIDDEN, 2 * z_dim), jnp.float32, -bound, bound)
    b2 = jax.random.uniform(k4, (2 * z_dim,), jnp.float32, -bound, bound)
    return w1, b1, w2, b2


def reference(x, w1, b1, w2, b2, z_dim=Z_DIM):
    h = jnp.maximum(x @ w1 + b1, 0.0)
    p = h @ w2 + b2
    return p[:, :z_dim], jax.nn.softplus(p[:, z_dim:]) + EPS


if __name__ == "__main__":
    key = jax.random.PRNGKey(0)
    kx, kp = jax.random.split(key)
    w1, b1, w2, b2 = init_params(kp, Z_DIM)

    # Small single-block case (exact f32 path).
    batch = 8
    x = jax.random.normal(kx, (batch, HIDDEN), jnp.float32)
    mu, sigma = gaussian_sample(x, w1, b1, w2, b2)
    jax.block_until_ready((mu, sigma))
    mu_ref, sg_ref = reference(x, w1, b1, w2, b2, Z_DIM)
    assert mu.shape == (batch, Z_DIM) and sigma.shape == (batch, Z_DIM)
    assert jnp.allclose(mu, mu_ref, atol=1e-5, rtol=1e-5)
    assert jnp.allclose(sigma, sg_ref, atol=1e-5, rtol=1e-5)
    assert bool(jnp.all(sigma > 0))

    # Multi-grid-step + ragged last block (no jnp.pad copy of x).
    batch2 = 200
    x2 = jax.random.normal(jax.random.PRNGKey(1), (batch2, HIDDEN), jnp.float32)
    mu2, sg2 = gaussian_sample(x2, w1, b1, w2, b2, block_batch=128)
    jax.block_until_ready((mu2, sg2))
    mu2_ref, sg2_ref = reference(x2, w1, b1, w2, b2, Z_DIM)
    assert jnp.allclose(mu2, mu2_ref, atol=1e-5, rtol=1e-5)
    assert jnp.allclose(sg2, sg2_ref, atol=1e-5, rtol=1e-5)

    # Optional bf16-matmul path (MXU-native); looser tolerance vs f32 ref.
    mu3, sg3 = gaussian_sample(x, w1, b1, w2, b2, use_bf16_matmul=True)
    jax.block_until_ready((mu3, sg3))
    assert jnp.allclose(mu3, mu_ref, atol=5e-2, rtol=5e-2)
    assert jnp.allclose(sg3, sg_ref, atol=5e-2, rtol=5e-2)

    # TODO(synk): torch.distributions.Independent(Normal(...), 1) has no
    # array-level equivalent; the kernel returns its parameters (mu, sigma).
    print("KERNEL_OK")
</pallas_src>

<mosaic_0001>
module attributes {stable_mosaic.version = 11 : i64} {
  func.func @_gaussian_sample_kernel(%arg0: i32, %arg1: memref<8x64xf32, #tpu.memory_space<vmem>>, %arg2: memref<64x64xf32, #tpu.memory_space<vmem>>, %arg3: memref<64x1xf32, #tpu.memory_space<vmem>>, %arg4: memref<8x64xf32, #tpu.memory_space<vmem>>, %arg5: memref<8x1xf32, #tpu.memory_space<vmem>>, %arg6: memref<8x64xf32, #tpu.memory_space<vmem>>, %arg7: memref<8x1xf32, #tpu.memory_space<vmem>>, %arg8: memref<8x8xf32, #tpu.memory_space<vmem>>, %arg9: memref<8x8xf32, #tpu.memory_space<vmem>>) attributes {dimension_semantics = [#tpu.dimension_semantics<parallel>], iteration_bounds = array<i64: 1>, scalar_prefetch = 0 : i64, scratch_operands = 0 : i64, tpu.core_type = #tpu.core_type<tc>, window_params = [{transform_indices = @transform_0, window_bounds = array<i64: 8, 64>}, {pipeline_mode = #tpu.pipeline_mode<synchronous>, transform_indices = @transform_1, window_bounds = array<i64: 64, 64>}, {pipeline_mode = #tpu.pipeline_mode<synchronous>, transform_indices = @transform_2, window_bounds = array<i64: 64, 1>}, {pipeline_mode = #tpu.pipeline_mode<synchronous>, transform_indices = @transform_3, window_bounds = array<i64: 8, 64>}, {pipeline_mode = #tpu.pipeline_mode<synchronous>, transform_indices = @transform_4, window_bounds = array<i64: 8, 1>}, {pipeline_mode = #tpu.pipeline_mode<synchronous>, transform_indices = @transform_5, window_bounds = array<i64: 8, 64>}, {pipeline_mode = #tpu.pipeline_mode<synchronous>, transform_indices = @transform_6, window_bounds = array<i64: 8, 1>}, {transform_indices = @transform_7, window_bounds = array<i64: 8, 8>}, {transform_indices = @transform_8, window_bounds = array<i64: 8, 8>}]} {
    %c0 = arith.constant 0 : index
    %c0_0 = arith.constant 0 : index
    %0 = vector.load %arg1[%c0, %c0_0] : memref<8x64xf32, #tpu.memory_space<vmem>>, vector<8x64xf32>
    %1 = tpu.transpose %0, [1, 0] : vector<8x64xf32> -> vector<64x8xf32>
    %c0_1 = arith.constant 0 : index
    %c0_2 = arith.constant 0 : index
    %2 = vector.load %arg2[%c0_1, %c0_2] : memref<64x64xf32, #tpu.memory_space<vmem>>, vector<64x64xf32>
    %cst = arith.constant dense<0.000000e+00> : vector<64x8xf32>
    %3 = tpu.matmul %2, %1, %cst {dimension_numbers = #tpu.dot_dimension_numbers<[1], [0], [0], [1], [0, 0, 1, 1], [], []>} : vector<64x64xf32>, vector<64x8xf32>, vector<64x8xf32> -> vector<64x8xf32>
    %c0_3 = arith.constant 0 : index
    %c0_4 = arith.constant 0 : index
    %4 = vector.load %arg3[%c0_3, %c0_4] : memref<64x1xf32, #tpu.memory_space<vmem>>, vector<64x1xf32>
    %5 = vector.broadcast %4 : vector<64x1xf32> to vector<64x8xf32>
    %6 = arith.addf %3, %5 : vector<64x8xf32>
    %cst_5 = arith.constant 0.000000e+00 : f32
    %7 = vector.broadcast %cst_5 : f32 to vector<64x8xf32>
    %8 = arith.maximumf %6, %7 : vector<64x8xf32>
    %c0_6 = arith.constant 0 : index
    %c0_7 = arith.constant 0 : index
    %9 = vector.load %arg4[%c0_6, %c0_7] : memref<8x64xf32, #tpu.memory_space<vmem>>, vector<8x64xf32>
    %cst_8 = arith.constant dense<0.000000e+00> : vector<8x8xf32>
    %10 = tpu.matmul %9, %8, %cst_8 {dimension_numbers = #tpu.dot_dimension_numbers<[1], [0], [0], [1], [0, 0, 1, 1], [], []>} : vector<8x64xf32>, vector<64x8xf32>, vector<8x8xf32> -> vector<8x8xf32>
    %c0_9 = arith.constant 0 : index
    %c0_10 = arith.constant 0 : index
    %11 = vector.load %arg5[%c0_9, %c0_10] : memref<8x1xf32, #tpu.memory_space<vmem>>, vector<8x1xf32>
    %12 = vector.broadcast %11 : vector<8x1xf32> to vector<8x8xf32>
    %13 = arith.addf %10, %12 : vector<8x8xf32>
    %c0_11 = arith.constant 0 : index
    %c0_12 = arith.constant 0 : index
    %14 = vector.load %arg6[%c0_11, %c0_12] : memref<8x64xf32, #tpu.memory_space<vmem>>, vector<8x64xf32>
    %cst_13 = arith.constant dense<0.000000e+00> : vector<8x8xf32>
    %15 = tpu.matmul %14, %8, %cst_13 {dimension_numbers = #tpu.dot_dimension_numbers<[1], [0], [0], [1], [0, 0, 1, 1], [], []>} : vector<8x64xf32>, vector<64x8xf32>, vector<8x8xf32> -> vector<8x8xf32>
    %c0_14 = arith.constant 0 : index
    %c0_15 = arith.constant 0 : index
    %16 = vector.load %arg7[%c0_14, %c0_15] : memref<8x1xf32, #tpu.memory_space<vmem>>, vector<8x1xf32>
    %17 = vector.broadcast %16 : vector<8x1xf32> to vector<8x8xf32>
    %18 = arith.addf %15, %17 : vector<8x8xf32>
    %19 = math.absf %18 : vector<8x8xf32>
    %cst_16 = arith.constant 0.000000e+00 : f32
    %20 = vector.broadcast %cst_16 : f32 to vector<8x8xf32>
    %21 = arith.subf %20, %19 : vector<8x8xf32>
    %22 = math.exp %21 : vector<8x8xf32>
    %23 = math.log1p %22 : vector<8x8xf32>
    %cst_17 = arith.constant 0.000000e+00 : f32
    %24 = vector.broadcast %cst_17 : f32 to vector<8x8xf32>
    %25 = arith.maximumf %18, %24 : vector<8x8xf32>
    %26 = arith.addf %23, %25 : vector<8x8xf32>
    %cst_18 = arith.constant 1.000000e-07 : f32
    %27 = vector.broadcast %cst_18 : f32 to vector<8x8xf32>
    %28 = arith.addf %26, %27 : vector<8x8xf32>
    %c0_19 = arith.constant 0 : index
    %c0_20 = arith.constant 0 : index
    %29 = vector.load %arg8[%c0_19, %c0_20] : memref<8x8xf32, #tpu.memory_space<vmem>>, vector<8x8xf32>
    tpu.vector_store %arg8[%c0_19, %c0_20], %13 {strides = array<i32>} : memref<8x8xf32, #tpu.memory_space<vmem>>, vector<8x8xf32>,
    %c0_21 = arith.constant 0 : index
    %c0_22 = arith.constant 0 : index
    %30 = vector.load %arg9[%c0_21, %c0_22] : memref<8x8xf32, #tpu.memory_space<vmem>>, vector<8x8xf32>
    tpu.vector_store %arg9[%c0_21, %c0_22], %28 {strides = array<i32>} : memref<8x8xf32, #tpu.memory_space<vmem>>, vector<8x8xf32>,
    return
  }
  func.func @transform_0(%arg0: i32) -> (i32, i32) {
    %c0_i32 = arith.constant 0 : i32
    %c0_i32_0 = arith.constant 0 : i32
    return %arg0, %c0_i32 : i32, i32
  }
  func.func @transform_1(%arg0: i32) -> (i32, i32) {
    %c0_i32 = arith.constant 0 : i32
    %c0_i32_0 = arith.constant 0 : i32
    %c0_i32_1 = arith.constant 0 : i32
    return %c0_i32, %c0_i32_0 : i32, i32
  }
  func.func @transform_2(%arg0: i32) -> (i32, i32) {
    %c0_i32 = arith.constant 0 : i32
    %c0_i32_0 = arith.constant 0 : i32
    %c0_i32_1 = arith.constant 0 : i32
    return %c0_i32, %c0_i32_0 : i32, i32
  }
  func.func @transform_3(%arg0: i32) -> (i32, i32) {
    %c0_i32 = arith.constant 0 : i32
    %c0_i32_0 = arith.constant 0 : i32
    %c0_i32_1 = arith.constant 0 : i32
    return %c0_i32, %c0_i32_0 : i32, i32
  }
  func.func @transform_4(%arg0: i32) -> (i32, i32) {
    %c0_i32 = arith.constant 0 : i32
    %c0_i32_0 = arith.constant 0 : i32
    %c0_i32_1 = arith.constant 0 : i32
    return %c0_i32, %c0_i32_0 : i32, i32
  }
  func.func @transform_5(%arg0: i32) -> (i32, i32) {
    %c0_i32 = arith.constant 0 : i32
    %c0_i32_0 = arith.constant 0 : i32
    %c0_i32_1 = arith.constant 0 : i32
    return %c0_i32, %c0_i32_0 : i32, i32
  }
  func.func @transform_6(%arg0: i32) -> (i32, i32) {
    %c0_i32 = arith.constant 0 : i32
    %c0_i32_0 = arith.constant 0 : i32
    %c0_i32_1 = arith.constant 0 : i32
    return %c0_i32, %c0_i32_0 : i32, i32
  }
  func.func @transform_7(%arg0: i32) -> (i32, i32) {
    %c0_i32 = arith.constant 0 : i32
    %c0_i32_0 = arith.constant 0 : i32
    return %c0_i32, %arg0 : i32, i32
  }
  func.func @transform_8(%arg0: i32) -> (i32, i32) {
    %c0_i32 = arith.constant 0 : i32
    %c0_i32_0 = arith.constant 0 : i32
    return %c0_i32, %arg0 : i32, i32
  }
}

</mosaic_0001>

<llo_original>
// kernel: gaussian_sample.1
$region0: #{gaussian_sample.1}
  #allocation0 [shape = 'u32[]', space=smem, size = 0x4, offset = 0x4, fixed_abs, tag = 'smem constant byte address 0x4 - core index']
  #allocation1 [shape = 'u32[144,128]{1,0:T(1,128)}', space=vmem, size = 0x12000, scoped, tag = 'internal scratch']
  %s0 = inlined_call_operand.vmem [shape: f32[8,64], index: 0, kind: input, shape index: {}]
  %s1 = inlined_call_operand.vmem [shape: f32[64,64], index: 1, kind: input, shape index: {}]
  %s2 = inlined_call_operand.vmem [shape: f32[64,1], index: 2, kind: input, shape index: {}]
  %s3 = inlined_call_operand.vmem [shape: f32[8,64], index: 3, kind: input, shape index: {}]
  %s4 = inlined_call_operand.vmem [shape: f32[8,1], index: 4, kind: input, shape index: {}]
  %s5 = inlined_call_operand.vmem [shape: f32[8,64], index: 5, kind: input, shape index: {}]
  %s6 = inlined_call_operand.vmem [shape: f32[8,1], index: 6, kind: input, shape index: {}]
  %s7 = inlined_call_operand.vmem [shape: f32[8,8], index: 7, kind: output, shape index: {0}]
  %s8 = inlined_call_operand.vmem [shape: f32[8,8], index: 8, kind: output, shape index: {1}]
  %9 = xla_tuple %s7, %s8
  %s10 = sld [smem:[#allocation0]]
  $region46: #{gaussian_sample.1} parent=0
    _
  %s12 = ssub.s32 1, %s10
  %s13 = scalar_select 0, %s12, %s10
  // Predicated region
  $region2: #{gaussian_sample.1} parent=0 // pred_check
    _
  $region3: #{gaussian_sample.1} parent=0 // pred_check_branch
    %15 = sbr.rel (0) target = $region5
  $region4: #{gaussian_sample.1} parent=0 // pred_region
    _
  $region5: #{gaussian_sample.1} parent=0 // pred_fallthru
    _
  // Predicated region
  $region6: #{gaussian_sample.1} parent=0 // pred_check
    _
  $region7: #{gaussian_sample.1} parent=0 // pred_check_branch
    %17 = sbr.rel (0) target = $region9
  $region8: #{gaussian_sample.1} parent=0 // pred_region
    _
  $region9: #{gaussian_sample.1} parent=0 // pred_fallthru
    _
  // Predicated region
  $region10: #{gaussian_sample.1} parent=0 // pred_check
    _
  $region11: #{gaussian_sample.1} parent=0 // pred_check_branch
    %19 = sbr.rel (0) target = $region13
  $region12: #{gaussian_sample.1} parent=0 // pred_region
    _
  $region13: #{gaussian_sample.1} parent=0 // pred_fallthru
    _
  // Predicated region
  $region14: #{gaussian_sample.1} parent=0 // pred_check
    _
  $region15: #{gaussian_sample.1} parent=0 // pred_check_branch
    %21 = sbr.rel (0) target = $region17
  $region16: #{gaussian_sample.1} parent=0 // pred_region
    _
  $region17: #{gaussian_sample.1} parent=0 // pred_fallthru
    _
  // Predicated region
  $region18: #{gaussian_sample.1} parent=0 // pred_check
    _
  $region19: #{gaussian_sample.1} parent=0 // pred_check_branch
    %23 = sbr.rel (0) target = $region21
  $region20: #{gaussian_sample.1} parent=0 // pred_region
    _
  $region21: #{gaussian_sample.1} parent=0 // pred_fallthru
    _
  // Predicated region
  $region22: #{gaussian_sample.1} parent=0 // pred_check
    _
  $region23: #{gaussian_sample.1} parent=0 // pred_check_branch
    %25 = sbr.rel (0) target = $region25
  $region24: #{gaussian_sample.1} parent=0 // pred_region
    _
  $region25: #{gaussian_sample.1} parent=0 // pred_fallthru
    _
  // Predicated region
  $region26: #{gaussian_sample.1} parent=0 // pred_check
    _
  $region27: #{gaussian_sample.1} parent=0 // pred_check_branch
    %27 = sbr.rel (0) target = $region29
  $region28: #{gaussian_sample.1} parent=0 // pred_region
    _
  $region29: #{gaussian_sample.1} parent=0 // pred_fallthru
    _
  %v28 = vld [vmem:[%s0] sm:$0xff]
  %v29 = vld [vmem:[%s1] sm:$0xff]
  %v30 = vld [vmem:[%s1 + $0x8] sm:$0xff]
  %v31 = vld [vmem:[%s1 + $0x10] sm:$0xff]
  %v32 = vld [vmem:[%s1 + $0x18] sm:$0xff]
  %v33 = vld [vmem:[%s1 + $0x20] sm:$0xff]
  %v34 = vld [vmem:[%s1 + $0x28] sm:$0xff]
  %v35 = vld [vmem:[%s1 + $0x30] sm:$0xff]
  %v36 = vld [vmem:[%s1 + $0x38] sm:$0xff]
  %v37 = vld [vmem:[%s2] sm:$0xff]
  %v38 = vld [vmem:[%s2 + $0x8] sm:$0xff]
  %v39 = vld [vmem:[%s2 + $0x10] sm:$0xff]
  %v40 = vld [vmem:[%s2 + $0x18] sm:$0xff]
  %v41 = vld [vmem:[%s2 + $0x20] sm:$0xff]
  %v42 = vld [vmem:[%s2 + $0x28] sm:$0xff]
  %v43 = vld [vmem:[%s2 + $0x30] sm:$0xff]
  %v44 = vld [vmem:[%s2 + $0x38] sm:$0xff]
  %46 = vset.pattern.permute.xlu0 0
  %47 = vperm.xlu0 %46, %v37
  %v48 = vpop.permute.xlu0 %47
  %51 = vset.pattern.permute.xlu0 0
  %52 = vperm.xlu0 %51, %v38
  %v53 = vpop.permute.xlu0 %52
  %56 = vset.pattern.permute.xlu0 0
  %57 = vperm.xlu0 %56, %v39
  %v58 = vpop.permute.xlu0 %57
  %61 = vset.pattern.permute.xlu0 0
  %62 = vperm.xlu0 %61, %v40
  %v63 = vpop.permute.xlu0 %62
  %66 = vset.pattern.permute.xlu0 0
  %67 = vperm.xlu0 %66, %v41
  %v68 = vpop.permute.xlu0 %67
  %71 = vset.pattern.permute.xlu0 0
  %72 = vperm.xlu0 %71, %v42
  %v73 = vpop.permute.xlu0 %72
  %76 = vset.pattern.permute.xlu0 0
  %77 = vperm.xlu0 %76, %v43
  %v78 = vpop.permute.xlu0 %77
  %81 = vset.pattern.permute.xlu0 0
  %82 = vperm.xlu0 %81, %v44
  %v83 = vpop.permute.xlu0 %82
  %vm85 = vcmask 523264
  %v87 = vsel %vm85, %v29, 0
  %v90 = vsel %vm85, %v30, 0
  %v93 = vsel %vm85, %v31, 0
  %v96 = vsel %vm85, %v32, 0
  %v99 = vsel %vm85, %v33, 0
  %v102 = vsel %vm85, %v34, 0
  %v105 = vsel %vm85, %v35, 0
  %v108 = vsel %vm85, %v36, 0
  %v111 = vsel %vm85, %v28, 0
  %113 = vmatprep.subr.mxu0 0.0
  %114 = vmatpush1.xpose.msra.mxu0 %v111
  %115 = vmatprep.subr.mxu0 0.0
  %116 = vmatpush1.xpose.msra.mxu0 0.0
  %117 = vmatprep.subr.mxu0 0.0
  %118 = vmatpush1.xpose.msra.mxu0 0.0
  %119 = vmatprep.subr.mxu0 0.0
  %120 = vmatpush1.xpose.msra.mxu0 0.0
  %121 = vmatprep.subr.mxu0 0.0
  %122 = vmatpush1.xpose.msra.mxu0 0.0
  %123 = vmatprep.subr.mxu0 0.0
  %124 = vmatpush1.xpose.msra.mxu0 0.0
  %125 = vmatprep.subr.mxu0 0.0
  %126 = vmatpush1.xpose.msra.mxu0 0.0
  %127 = vmatprep.subr.mxu0 0.0
  %128 = vmatpush1.xpose.msra.mxu0 0.0
  %129 = vmatprep.subr.mxu0 0.0
  %130 = vmatpush1.xpose.msra.mxu0 0.0
  %131 = vmatprep.subr.mxu0 0.0
  %132 = vmatpush1.xpose.msra.mxu0 0.0
  %133 = vmatprep.subr.mxu0 0.0
  %134 = vmatpush1.xpose.msra.mxu0 0.0
  %135 = vmatprep.subr.mxu0 0.0
  %136 = vmatpush1.xpose.msra.mxu0 0.0
  %137 = vmatprep.subr.mxu0 0.0
  %138 = vmatpush1.xpose.msra.mxu0 0.0
  %139 = vmatprep.subr.mxu0 0.0
  %140 = vmatpush1.xpose.msra.mxu0 0.0
  %141 = vmatprep.subr.mxu0 0.0
  %142 = vmatpush1.xpose.msra.mxu0 0.0
  %143 = vmatprep.subr.mxu0 0.0
  %144 = vmatpush1.xpose.msra.mxu0 0.0
  %145 = vmatprep.subr.mxu0 0.0
  %146 = vmatpush1.xpose.msra.mxu0 0.0
  %147 = vmatprep.subr.mxu0 0.0
  %148 = vmatpush1.xpose.msra.mxu0 0.0
  %149 = vmatprep.subr.mxu0 0.0
  %150 = vmatpush1.xpose.msra.mxu0 0.0
  %151 = vmatprep.subr.mxu0 0.0
  %152 = vmatpush1.xpose.msra.mxu0 0.0
  %153 = vmatprep.subr.mxu0 0.0
  %154 = vmatpush1.xpose.msra.mxu0 0.0
  %155 = vmatprep.subr.mxu0 0.0
  %156 = vmatpush1.xpose.msra.mxu0 0.0
  %157 = vmatprep.subr.mxu0 0.0
  %158 = vmatpush1.xpose.msra.mxu0 0.0
  %159 = vmatprep.subr.mxu0 0.0
  %160 = vmatpush1.xpose.msra.mxu0 0.0
  %161 = vmatprep.subr.mxu0 0.0
  %162 = vmatpush1.xpose.msra.mxu0 0.0
  %163 = vmatprep.subr.mxu0 0.0
  %164 = vmatpush1.xpose.msra.mxu0 0.0
  %165 = vmatprep.subr.mxu0 0.0
  %166 = vmatpush1.xpose.msra.mxu0 0.0
  %167 = vmatprep.subr.mxu0 0.0
  %168 = vmatpush1.xpose.msra.mxu0 0.0
  %169 = vmatprep.subr.mxu0 0.0
  %170 = vmatpush1.xpose.msra.mxu0 0.0
  %171 = vmatprep.subr.mxu0 0.0
  %172 = vmatpush1.xpose.msra.mxu0 0.0
  %173 = vmatprep.subr.mxu0 0.0
  %174 = vmatpush1.xpose.msra.mxu0 0.0
  %175 = vmatprep.subr.mxu0 0.0
  %176 = vmatpush1.xpose.msra.mxu0 0.0
  %177 = vmatprep.mubr.f32.mxu0 0.0
  %178 = vmatmul.mubr.f32.gmra.mrb[0].mxu0 %v87
  %v179 = vpop.f32.mrb[0].mxu0
  %v180 = vadd.f32 %v48, %v179
  %v181 = vpop.f32.mrb[0].mxu0
  %182 = vmatprep.mubr.f32.mxu0 0.0
  %183 = vmatmul.mubr.f32.gmra.mrb[0].mxu0 %v90
  %v184 = vpop.f32.mrb[0].mxu0
  %v185 = vadd.f32 %v53, %v184
  %v186 = vpop.f32.mrb[0].mxu0
  %187 = vmatprep.mubr.f32.mxu0 0.0
  %188 = vmatmul.mubr.f32.gmra.mrb[0].mxu0 %v93
  %v189 = vpop.f32.mrb[0].mxu0
  %v190 = vadd.f32 %v58, %v189
  %v191 = vpop.f32.mrb[0].mxu0
  %192 = vmatprep.mubr.f32.mxu0 0.0
  %193 = vmatmul.mubr.f32.gmra.mrb[0].mxu0 %v96
  %v194 = vpop.f32.mrb[0].mxu0
  %v195 = vadd.f32 %v63, %v194
  %v196 = vpop.f32.mrb[0].mxu0
  %197 = vmatprep.mubr.f32.mxu0 0.0
  %198 = vmatmul.mubr.f32.gmra.mrb[0].mxu0 %v99
  %v199 = vpop.f32.mrb[0].mxu0
  %v200 = vadd.f32 %v68, %v199
  %v201 = vpop.f32.mrb[0].mxu0
  %202 = vmatprep.mubr.f32.mxu0 0.0
  %203 = vmatmul.mubr.f32.gmra.mrb[0].mxu0 %v102
  %v204 = vpop.f32.mrb[0].mxu0
  %v205 = vadd.f32 %v73, %v204
  %v206 = vpop.f32.mrb[0].mxu0
  %207 = vmatprep.mubr.f32.mxu0 0.0
  %208 = vmatmul.mubr.f32.gmra.mrb[0].mxu0 %v105
  %v209 = vpop.f32.mrb[0].mxu0
  %v210 = vadd.f32 %v78, %v209
  %v211 = vpop.f32.mrb[0].mxu0
  %212 = vmatprep.mubr.f32.mxu0 0.0
  %213 = vmatmul.mubr.f32.gmra.mrb[0].mxu0 %v108
  %v214 = vpop.f32.mrb[0].mxu0
  %v215 = vadd.f32 %v83, %v214
  %v216 = vpop.f32.mrb[0].mxu0
  %217 = vdwg.mxu0
  %v218 = vmax.f32 %v180, 0.0
  %v219 = vmax.f32 %v185, 0.0
  %v220 = vmax.f32 %v190, 0.0
  %v221 = vmax.f32 %v195, 0.0
  %v222 = vmax.f32 %v200, 0.0
  %v223 = vmax.f32 %v205, 0.0
  %v224 = vmax.f32 %v210, 0.0
  %v225 = vmax.f32 %v215, 0.0
  %v226 = vld [vmem:[%s3] sm:$0xff]
  %v227 = vld [vmem:[%s4] sm:$0xff]
  %229 = vset.pattern.permute.xlu0 0
  %230 = vperm.xlu0 %229, %v227
  %v231 = vpop.permute.xlu0 %230
  %v234 = vsel %vm85, %v226, 0
  %236 = vmatprep.subr.mxu0 0.0
  %237 = vmatpush1.msra.mxu0 %v218
  %238 = vmatprep.subr.mxu0 0.0
  %239 = vmatpush1.msra.mxu0 %v219
  %240 = vmatprep.subr.mxu0 0.0
  %241 = vmatpush1.msra.mxu0 %v220
  %242 = vmatprep.subr.mxu0 0.0
  %243 = vmatpush1.msra.mxu0 %v221
  %244 = vmatprep.subr.mxu0 0.0
  %245 = vmatpush1.msra.mxu0 %v222
  %246 = vmatprep.subr.mxu0 0.0
  %247 = vmatpush1.msra.mxu0 %v223
  %248 = vmatprep.subr.mxu0 0.0
  %249 = vmatpush1.msra.mxu0 %v224
  %250 = vmatprep.subr.mxu0 0.0
  %251 = vmatpush1.msra.mxu0 %v225
  %252 = vmatprep.subr.mxu0 0.0
  %253 = vmatpush1.msra.mxu0 0.0
  %254 = vmatprep.subr.mxu0 0.0
  %255 = vmatpush1.msra.mxu0 0.0
  %256 = vmatprep.subr.mxu0 0.0
  %257 = vmatpush1.msra.mxu0 0.0
  %258 = vmatprep.subr.mxu0 0.0
  %259 = vmatpush1.msra.mxu0 0.0
  %260 = vmatprep.subr.mxu0 0.0
  %261 = vmatpush1.msra.mxu0 0.0
  %262 = vmatprep.subr.mxu0 0.0
  %263 = vmatpush1.msra.mxu0 0.0
  %264 = vmatprep.subr.mxu0 0.0
  %265 = vmatpush1.msra.mxu0 0.0
  %266 = vmatprep.subr.mxu0 0.0
  %267 = vmatpush1.msra.mxu0 0.0
  %268 = vmatprep.subr.mxu0 0.0
  %269 = vmatpush1.msra.mxu0 0.0
  %270 = vmatprep.subr.mxu0 0.0
  %271 = vmatpush1.msra.mxu0 0.0
  %272 = vmatprep.subr.mxu0 0.0
  %273 = vmatpush1.msra.mxu0 0.0
  %274 = vmatprep.subr.mxu0 0.0
  %275 = vmatpush1.msra.mxu0 0.0
  %276 = vmatprep.subr.mxu0 0.0
  %277 = vmatpush1.msra.mxu0 0.0
  %278 = vmatprep.subr.mxu0 0.0
  %279 = vmatpush1.msra.mxu0 0.0
  %280 = vmatprep.subr.mxu0 0.0
  %281 = vmatpush1.msra.mxu0 0.0
  %282 = vmatprep.subr.mxu0 0.0
  %283 = vmatpush1.msra.mxu0 0.0
  %284 = vmatprep.subr.mxu0 0.0
  %285 = vmatpush1.msra.mxu0 0.0
  %286 = vmatprep.subr.mxu0 0.0
  %287 = vmatpush1.msra.mxu0 0.0
  %288 = vmatprep.subr.mxu0 0.0
  %289 = vmatpush1.msra.mxu0 0.0
  %290 = vmatprep.subr.mxu0 0.0
  %291 = vmatpush1.msra.mxu0 0.0
  %292 = vmatprep.subr.mxu0 0.0
  %293 = vmatpush1.msra.mxu0 0.0
  %294 = vmatprep.subr.mxu0 0.0
  %295 = vmatpush1.msra.mxu0 0.0
  %296 = vmatprep.subr.mxu0 0.0
  %297 = vmatpush1.msra.mxu0 0.0
  %298 = vmatprep.subr.mxu0 0.0
  %299 = vmatpush1.msra.mxu0 0.0
  %300 = vmatprep.mubr.f32.mxu0 0.0
  %301 = vmatmul.mubr.f32.gmra.mrb[0].mxu0 %v234
  %v302 = vpop.f32.mrb[0].mxu0
  %v303 = vadd.f32 %v231, %v302
  %v304 = vpop.f32.mrb[0].mxu0
  %305 = vdwg.mxu0
  %v306 = vld [vmem:[%s5] sm:$0xff]
  %v307 = vld [vmem:[%s6] sm:$0xff]
  %309 = vset.pattern.permute.xlu0 0
  %310 = vperm.xlu0 %309, %v307
  %v311 = vpop.permute.xlu0 %310
  %v314 = vsel %vm85, %v306, 0
  %316 = vmatprep.subr.mxu0 0.0
  %317 = vmatpush1.msra.mxu0 %v218
  %318 = vmatprep.subr.mxu0 0.0
  %319 = vmatpush1.msra.mxu0 %v219
  %320 = vmatprep.subr.mxu0 0.0
  %321 = vmatpush1.msra.mxu0 %v220
  %322 = vmatprep.subr.mxu0 0.0
  %323 = vmatpush1.msra.mxu0 %v221
  %324 = vmatprep.subr.mxu0 0.0
  %325 = vmatpush1.msra.mxu0 %v222
  %326 = vmatprep.subr.mxu0 0.0
  %327 = vmatpush1.msra.mxu0 %v223
  %328 = vmatprep.subr.mxu0 0.0
  %329 = vmatpush1.msra.mxu0 %v224
  %330 = vmatprep.subr.mxu0 0.0
  %331 = vmatpush1.msra.mxu0 %v225
  %332 = vmatprep.subr.mxu0 0.0
  %333 = vmatpush1.msra.mxu0 0.0
  %334 = vmatprep.subr.mxu0 0.0
  %335 = vmatpush1.msra.mxu0 0.0
  %336 = vmatprep.subr.mxu0 0.0
  %337 = vmatpush1.msra.mxu0 0.0
  %338 = vmatprep.subr.mxu0 0.0
  %339 = vmatpush1.msra.mxu0 0.0
  %340 = vmatprep.subr.mxu0 0.0
  %341 = vmatpush1.msra.mxu0 0.0
  %342 = vmatprep.subr.mxu0 0.0
  %343 = vmatpush1.msra.mxu0 0.0
  %344 = vmatprep.subr.mxu0 0.0
  %345 = vmatpush1.msra.mxu0 0.0
  %346 = vmatprep.subr.mxu0 0.0
  %347 = vmatpush1.msra.mxu0 0.0
  %348 = vmatprep.subr.mxu0 0.0
  %349 = vmatpush1.msra.mxu0 0.0
  %350 = vmatprep.subr.mxu0 0.0
  %351 = vmatpush1.msra.mxu0 0.0
  %352 = vmatprep.subr.mxu0 0.0
  %353 = vmatpush1.msra.mxu0 0.0
  %354 = vmatprep.subr.mxu0 0.0
  %355 = vmatpush1.msra.mxu0 0.0
  %356 = vmatprep.subr.mxu0 0.0
  %357 = vmatpush1.msra.mxu0 0.0
  %358 = vmatprep.subr.mxu0 0.0
  %359 = vmatpush1.msra.mxu0 0.0
  %360 = vmatprep.subr.mxu0 0.0
  %361 = vmatpush1.msra.mxu0 0.0
  %362 = vmatprep.subr.mxu0 0.0
  %363 = vmatpush1.msra.mxu0 0.0
  %364 = vmatprep.subr.mxu0 0.0
  %365 = vmatpush1.msra.mxu0 0.0
  %366 = vmatprep.subr.mxu0 0.0
  %367 = vmatpush1.msra.mxu0 0.0
  %368 = vmatprep.subr.mxu0 0.0
  %369 = vmatpush1.msra.mxu0 0.0
  %370 = vmatprep.subr.mxu0 0.0
  %371 = vmatpush1.msra.mxu0 0.0
  %372 = vmatprep.subr.mxu0 0.0
  %373 = vmatpush1.msra.mxu0 0.0
  %374 = vmatprep.subr.mxu0 0.0
  %375 = vmatpush1.msra.mxu0 0.0
  %376 = vmatprep.subr.mxu0 0.0
  %377 = vmatpush1.msra.mxu0 0.0
  %378 = vmatprep.subr.mxu0 0.0
  %379 = vmatpush1.msra.mxu0 0.0
  %380 = vmatprep.mubr.f32.mxu0 0.0
  %381 = vmatmul.mubr.f32.gmra.mrb[0].mxu0 %v314
  %v382 = vpop.f32.mrb[0].mxu0
  %v383 = vadd.f32 %v311, %v382
  %v384 = vpop.f32.mrb[0].mxu0
  %385 = vdwg.mxu0
  %v386 = vand.u32 2147483647, %v383
  %v387 = vsub.f32 0.0, %v386
  %v388 = vmul.f32 %v387, 1.442695
  %v389 = vpow.pop %v388
  %v390 = vadd.f32 %v389, 1.0
  %v391 = vlog2.pop %v390
  %v392 = vmul.f32 %v391, 0.6931472
  %v393 = vmul.f32 -0.5, %v389
  %v394 = vadd.f32 %v393, 1.0
  %v395 = vmul.f32 %v394, %v389
  %v396 = vand.u32 2147483647, %v389
  %vm397 = vcmp.lt.f32.partialorder %v396, 0.0004427343
  %v398 = vsel %vm397, %v395, %v392
  %v399 = vmax.f32 %v383, 0.0
  %v400 = vadd.f32 %v398, %v399
  %v401 = vadd.f32 %v400, 1e-07
  %vm402 = vcmask 64512
  %403 = vst.msk [vmem:[%s7] sm:$0xff] %vm402, %v303
  %404 = vst.msk [vmem:[%s8] sm:$0xff] %vm402, %v401
  // Predicated region
  $region30: #{gaussian_sample.1} parent=0 // pred_check
    _
  $region31: #{gaussian_sample.1} parent=0 // pred_check_branch
    %406 = sbr.rel (0) target = $region33
  $region32: #{gaussian_sample.1} parent=0 // pred_region
    _
  $region33: #{gaussian_sample.1} parent=0 // pred_fallthru
    _
  // Predicated region
  $region34: #{gaussian_sample.1} parent=0 // pred_check
    _
  $region35: #{gaussian_sample.1} parent=0 // pred_check_branch
    %408 = sbr.rel (0) target = $region37
  $region36: #{gaussian_sample.1} parent=0 // pred_region
    _
  $region37: #{gaussian_sample.1} parent=0 // pred_fallthru
    _
  // Predicated region
  $region38: #{gaussian_sample.1} parent=0 // pred_check
    _
  $region39: #{gaussian_sample.1} parent=0 // pred_check_branch
    %410 = sbr.rel (0) target = $region41
  $region40: #{gaussian_sample.1} parent=0 // pred_region
    _
  $region41: #{gaussian_sample.1} parent=0 // pred_fallthru
    _
  // Predicated region
  $region42: #{gaussian_sample.1} parent=0 // pred_check
    _
  $region43: #{gaussian_sample.1} parent=0 // pred_check_branch
    %412 = sbr.rel (0) target = $region45
  $region44: #{gaussian_sample.1} parent=0 // pred_region
    _
  $region45: #{gaussian_sample.1} parent=0 // pred_fallthru
    _

</llo_original>
